<compile_context>
chip_gen: v6e
topology: v6e:2x2x1
jax: 0.10.0
libtpu: 0.0.40
codegen_flags: <defaults>
</compile_context>

<pallas_src>
import math

import jax
import jax.numpy as jnp
from jax import lax
from jax.experimental import pallas as pl
from jax.experimental.pallas import tpu as pltpu


def _round_up(x, m):
    return (x + m - 1) // m * m


# Contract dim 1 (In) of both operands: (TM, In) x (TN, In) -> (TM, TN),
# i.e. x @ w.T without materializing a transposed weight tile.
_DN = (((1,), (1,)), ((), ()))


# ----------------------------- Pallas kernels ------------------------------ #
def _noisy_linear_train_kernel(x_ref, wmu_ref, wsig_ref, ein_ref, eout_ref,
                               bias_ref, o_ref):
    # y = x @ mu^T + ((x * eps_in) @ sigma^T) * eps_out + bias
    # Noise elementwise math in f32 (v5e VPU has no bf16); matmul operands are
    # cast to the weight dtype (bf16 streaming halves HBM traffic), f32 acc.
    x = x_ref[...]                                   # (TM, In)  f32
    xn = x * ein_ref[...]                            # (TM, In)  f32
    y = lax.dot_general(x.astype(wmu_ref.dtype), wmu_ref[...],
                        dimension_numbers=_DN,
                        preferred_element_type=jnp.float32)
    yn = lax.dot_general(xn.astype(wsig_ref.dtype), wsig_ref[...],
                         dimension_numbers=_DN,
                         preferred_element_type=jnp.float32)
    y = y + yn * eout_ref[...]                       # (1, TN) lane-dense scale
    o_ref[...] = (y + bias_ref[...]).astype(o_ref.dtype)


def _noisy_linear_eval_kernel(x_ref, wmu_ref, bias_ref, o_ref):
    # Eval mode: mu-only path (sigma / epsilon never read or DMA'd).
    y = lax.dot_general(x_ref[...].astype(wmu_ref.dtype), wmu_ref[...],
                        dimension_numbers=_DN,
                        preferred_element_type=jnp.float32)
    o_ref[...] = (y + bias_ref[...]).astype(o_ref.dtype)


# ---------------------------- Tile-size heuristics -------------------------- #
# Budget for the double-buffered mu+sigma tiles: safe under v5e's 16 MiB scoped
# default and v7x's 32 MiB scoped / 64 MiB physical.
_WEIGHT_STREAM_BUDGET = 8 << 20


def _pick_out_tile(out_features, in_features, w_itemsize):
    if out_features % 128 != 0:
        # Ragged Out: a single full-dim tile (block dim == array dim is legal),
        # so the weights are never padded.  Fine for DQN-sized layers.
        # TODO(synk): remainder tile + masked store for huge ragged Out.
        return out_features
    for tn in (512, 384, 256, 128):
        if (out_features % tn == 0
                and 2 * 2 * tn * in_features * w_itemsize <= _WEIGHT_STREAM_BUDGET):
            return tn
    return 128


def _pick_batch_tile(b_padded):
    for tm in range(min(b_padded, 128), 0, -8):
        if b_padded % tm == 0:
            return tm
    return 8


# -------------------------------- Wrapper ---------------------------------- #
def noisy_linear_forward(x, weight_mu, weight_sigma, bias_mu, bias_sigma,
                         eps_in, eps_out, *, training=True,
                         out_tile=None, batch_tile=None):
    """Pallas forward for NoisyLinear.

    x:            (B, In)    float32
    weight_mu/σ:  (Out, In)  float32 or bfloat16 (bf16 halves weight HBM traffic)
    bias_mu/σ:    (Out,)     float32
    eps_in:       (In,)      float32   factorized noise (row factor)
    eps_out:      (Out,)     float32   factorized noise (col factor == bias_eps)
    returns       (B, Out)   x.dtype
    """
    B, In = x.shape
    Out = weight_mu.shape[0]
    out_dtype = x.dtype
    w_itemsize = weight_mu.dtype.itemsize

    # Only the (tiny) activation is padded; weights stream from HBM unpadded.
    B_p = _round_up(B, 8)
    if B_p != B:
        x = jnp.pad(x, ((0, B_p - B), (0, 0)))

    TM = batch_tile if batch_tile is not None else _pick_batch_tile(B_p)
    TN = out_tile if out_tile is not None else _pick_out_tile(Out, In, w_itemsize)

    # Out outermost / batch innermost: the weight block index is constant
    # across consecutive grid steps, so mu/sigma tiles are not re-DMA'd per
    # batch tile.  Leading "parallel" Out axis -> v7x megacore shards weights.
    grid = (Out // TN, B_p // TM)
    x_spec = pl.BlockSpec((TM, In), lambda j, i: (i, 0))
    w_spec = pl.BlockSpec((TN, In), lambda j, i: (j, 0))
    row_out_spec = pl.BlockSpec((1, TN), lambda j, i: (0, j))
    out_spec = pl.BlockSpec((TM, TN), lambda j, i: (i, j))
    out_shape = jax.ShapeDtypeStruct((B_p, Out), out_dtype)
    cparams = pltpu.CompilerParams(
        dimension_semantics=("parallel", "parallel"))

    # Effective bias is tiny: form it once in the wrapper, one add in-kernel.
    bias_eff = (bias_mu + bias_sigma * eps_out) if training else bias_mu
    bias_row = bias_eff.astype(jnp.float32).reshape(1, Out)

    if training:
        ein_row = eps_in.astype(jnp.float32).reshape(1, In)
        eout_row = eps_out.astype(jnp.float32).reshape(1, Out)
        cost = pl.CostEstimate(
            flops=4 * B_p * In * Out + 3 * B_p * In + 2 * B_p * Out,
            transcendentals=0,
            bytes_accessed=(2 * Out * In * w_itemsize
                            + 4 * (B_p * In + B_p * Out + In + 2 * Out)))
        y = pl.pallas_call(
            _noisy_linear_train_kernel,
            out_shape=out_shape,
            grid=grid,
            in_specs=[
                x_spec,                                     # x
                w_spec,                                     # weight_mu
                w_spec,                                     # weight_sigma
                pl.BlockSpec((1, In), lambda j, i: (0, 0)), # eps_in row
                row_out_spec,                               # eps_out row
                row_out_spec,                               # effective bias
            ],
            out_specs=out_spec,
            compiler_params=cparams,
            cost_estimate=cost,
        )(x, weight_mu, weight_sigma, ein_row, eout_row, bias_row)
    else:
        cost = pl.CostEstimate(
            flops=2 * B_p * In * Out + B_p * Out,
            transcendentals=0,
            bytes_accessed=(Out * In * w_itemsize
                            + 4 * (B_p * In + B_p * Out + Out)))
        y = pl.pallas_call(
            _noisy_linear_eval_kernel,
            out_shape=out_shape,
            grid=grid,
            in_specs=[x_spec, w_spec, row_out_spec],
            out_specs=out_spec,
            compiler_params=cparams,
            cost_estimate=cost,
        )(x, weight_mu, bias_row)

    return y if B_p == B else y[:B]


# ------------------------ Parameter / noise init --------------------------- #
def _scale_noise(key, size):
    """sign(n) * sqrt(|n|), n ~ N(0,1)  (torch _scale_noise)."""
    n = jax.random.normal(key, (size,), dtype=jnp.float32)
    return jnp.sign(n) * jnp.sqrt(jnp.abs(n))


def init_noisy_linear(key, in_features, out_features, std_init=0.5):
    k_wmu, k_bmu, k_ein, k_eout = jax.random.split(key, 4)
    mu_range = 1.0 / math.sqrt(in_features)

    weight_mu = jax.random.uniform(
        k_wmu, (out_features, in_features), jnp.float32, -mu_range, mu_range)
    bias_mu = jax.random.uniform(
        k_bmu, (out_features,), jnp.float32, -mu_range, mu_range)
    weight_sigma = jnp.full((out_features, in_features),
                            std_init / math.sqrt(in_features), jnp.float32)
    bias_sigma = jnp.full((out_features,),
                          std_init / math.sqrt(out_features), jnp.float32)

    # reset_noise(): keep the factorized factors; the dense
    # weight_epsilon = eps_out ⊗ eps_in is never materialized.
    eps_in = _scale_noise(k_ein, in_features)
    eps_out = _scale_noise(k_eout, out_features)

    return dict(weight_mu=weight_mu, weight_sigma=weight_sigma,
                bias_mu=bias_mu, bias_sigma=bias_sigma,
                eps_in=eps_in, eps_out=eps_out)


# ------------------------------- Reference -------------------------------- #
def noisy_linear_ref(x, weight_mu, weight_sigma, bias_mu, bias_sigma,
                     eps_in, eps_out, training=True):
    wmu = weight_mu.astype(jnp.float32)
    wsig = weight_sigma.astype(jnp.float32)
    if training:
        w = wmu + wsig * jnp.outer(eps_out, eps_in)
        b = bias_mu + bias_sigma * eps_out
    else:
        w, b = wmu, bias_mu
    return x @ w.T + b


def _run_case(key, batch, in_features, out_features, *, weights_dtype=jnp.float32,
              out_tile=None, batch_tile=None, atol=1e-5, rtol=1e-5):
    k_param, k_x = jax.random.split(key)
    p = init_noisy_linear(k_param, in_features, out_features, std_init=0.5)
    x = jax.random.normal(k_x, (batch, in_features), dtype=jnp.float32)

    # bf16 streaming path: weights are *stored* in bf16 (cast once, outside).
    wmu = p["weight_mu"].astype(weights_dtype)
    wsig = p["weight_sigma"].astype(weights_dtype)

    for training in (True, False):
        y = jax.block_until_ready(
            noisy_linear_forward(
                x, wmu, wsig, p["bias_mu"], p["bias_sigma"],
                p["eps_in"], p["eps_out"], training=training,
                out_tile=out_tile, batch_tile=batch_tile))
        y_ref = noisy_linear_ref(x, wmu, wsig, p["bias_mu"], p["bias_sigma"],
                                 p["eps_in"], p["eps_out"], training=training)
        assert y.shape == (batch, out_features)
        assert jnp.allclose(y, y_ref, atol=atol, rtol=rtol), \
            f"mismatch (training={training}, B={batch}, In={in_features}, " \
            f"Out={out_features}, dtype={weights_dtype})"


# --------------------------------- Main ------------------------------------ #
if __name__ == "__main__":
    key = jax.random.PRNGKey(0)
    k1, k2, k3, k4 = jax.random.split(key, 4)

    # Ragged shapes: no weight padding, single full-dim Out tile.
    _run_case(k1, batch=4, in_features=32, out_features=64)
    # Aligned shapes: lane-dense output tile, single grid step.
    _run_case(k2, batch=8, in_features=128, out_features=128)
    # Multi-tile grid (2 Out tiles x 4 batch tiles): exercises index maps and
    # weight-tile reuse across the inner (batch) grid axis.
    _run_case(k3, batch=32, in_features=128, out_features=256,
              out_tile=128, batch_tile=8)
    # bf16 weight streaming (weights stored bf16, f32 accumulation).
    _run_case(k4, batch=16, in_features=128, out_features=256,
              weights_dtype=jnp.bfloat16, atol=3e-2, rtol=3e-2)

    print("KERNEL_OK")
</pallas_src>

<mosaic_0001>
module attributes {stable_mosaic.version = 11 : i64} {
  func.func @_noisy_linear_train_kernel(%arg0: i32, %arg1: i32, %arg2: memref<8x32xf32, #tpu.memory_space<vmem>>, %arg3: memref<64x32xf32, #tpu.memory_space<vmem>>, %arg4: memref<64x32xf32, #tpu.memory_space<vmem>>, %arg5: memref<1x32xf32, #tpu.memory_space<vmem>>, %arg6: memref<1x64xf32, #tpu.memory_space<vmem>>, %arg7: memref<1x64xf32, #tpu.memory_space<vmem>>, %arg8: memref<8x64xf32, #tpu.memory_space<vmem>>) attributes {dimension_semantics = [#tpu.dimension_semantics<parallel>, #tpu.dimension_semantics<parallel>], iteration_bounds = array<i64: 1, 1>, scalar_prefetch = 0 : i64, scratch_operands = 0 : i64, tpu.core_type = #tpu.core_type<tc>, window_params = [{transform_indices = @transform_0, window_bounds = array<i64: 8, 32>}, {transform_indices = @transform_1, window_bounds = array<i64: 64, 32>}, {transform_indices = @transform_2, window_bounds = array<i64: 64, 32>}, {pipeline_mode = #tpu.pipeline_mode<synchronous>, transform_indices = @transform_3, window_bounds = array<i64: 1, 32>}, {transform_indices = @transform_4, window_bounds = array<i64: 1, 64>}, {transform_indices = @transform_5, window_bounds = array<i64: 1, 64>}, {transform_indices = @transform_6, window_bounds = array<i64: 8, 64>}]} {
    %c0 = arith.constant 0 : index
    %c0_0 = arith.constant 0 : index
    %0 = vector.load %arg2[%c0, %c0_0] : memref<8x32xf32, #tpu.memory_space<vmem>>, vector<8x32xf32>
    %c0_1 = arith.constant 0 : index
    %c0_2 = arith.constant 0 : index
    %1 = vector.load %arg5[%c0_1, %c0_2] : memref<1x32xf32, #tpu.memory_space<vmem>>, vector<1x32xf32>
    %2 = vector.broadcast %1 : vector<1x32xf32> to vector<8x32xf32>
    %3 = arith.mulf %0, %2 : vector<8x32xf32>
    %c0_3 = arith.constant 0 : index
    %c0_4 = arith.constant 0 : index
    %4 = vector.load %arg3[%c0_3, %c0_4] : memref<64x32xf32, #tpu.memory_space<vmem>>, vector<64x32xf32>
    %cst = arith.constant dense<0.000000e+00> : vector<8x64xf32>
    %5 = tpu.matmul %0, %4, %cst {dimension_numbers = #tpu.dot_dimension_numbers<[1], [1], [0], [0], [0, 0, 1, 0], [], []>} : vector<8x32xf32>, vector<64x32xf32>, vector<8x64xf32> -> vector<8x64xf32>
    %c0_5 = arith.constant 0 : index
    %c0_6 = arith.constant 0 : index
    %6 = vector.load %arg4[%c0_5, %c0_6] : memref<64x32xf32, #tpu.memory_space<vmem>>, vector<64x32xf32>
    %cst_7 = arith.constant dense<0.000000e+00> : vector<8x64xf32>
    %7 = tpu.matmul %3, %6, %cst_7 {dimension_numbers = #tpu.dot_dimension_numbers<[1], [1], [0], [0], [0, 0, 1, 0], [], []>} : vector<8x32xf32>, vector<64x32xf32>, vector<8x64xf32> -> vector<8x64xf32>
    %c0_8 = arith.constant 0 : index
    %c0_9 = arith.constant 0 : index
    %8 = vector.load %arg6[%c0_8, %c0_9] : memref<1x64xf32, #tpu.memory_space<vmem>>, vector<1x64xf32>
    %9 = vector.broadcast %8 : vector<1x64xf32> to vector<8x64xf32>
    %10 = arith.mulf %7, %9 : vector<8x64xf32>
    %11 = arith.addf %5, %10 : vector<8x64xf32>
    %c0_10 = arith.constant 0 : index
    %c0_11 = arith.constant 0 : index
    %12 = vector.load %arg7[%c0_10, %c0_11] : memref<1x64xf32, #tpu.memory_space<vmem>>, vector<1x64xf32>
    %13 = vector.broadcast %12 : vector<1x64xf32> to vector<8x64xf32>
    %14 = arith.addf %11, %13 : vector<8x64xf32>
    %c0_12 = arith.constant 0 : index
    %c0_13 = arith.constant 0 : index
    %15 = vector.load %arg8[%c0_12, %c0_13] : memref<8x64xf32, #tpu.memory_space<vmem>>, vector<8x64xf32>
    tpu.vector_store %arg8[%c0_12, %c0_13], %14 {strides = array<i32>} : memref<8x64xf32, #tpu.memory_space<vmem>>, vector<8x64xf32>,
    return
  }
  func.func @transform_0(%arg0: i32, %arg1: i32) -> (i32, i32) {
    %c0_i32 = arith.constant 0 : i32
    %c0_i32_0 = arith.constant 0 : i32
    return %arg1, %c0_i32 : i32, i32
  }
  func.func @transform_1(%arg0: i32, %arg1: i32) -> (i32, i32) {
    %c0_i32 = arith.constant 0 : i32
    %c0_i32_0 = arith.constant 0 : i32
    return %arg0, %c0_i32 : i32, i32
  }
  func.func @transform_2(%arg0: i32, %arg1: i32) -> (i32, i32) {
    %c0_i32 = arith.constant 0 : i32
    %c0_i32_0 = arith.constant 0 : i32
    return %arg0, %c0_i32 : i32, i32
  }
  func.func @transform_3(%arg0: i32, %arg1: i32) -> (i32, i32) {
    %c0_i32 = arith.constant 0 : i32
    %c0_i32_0 = arith.constant 0 : i32
    %c0_i32_1 = arith.constant 0 : i32
    return %c0_i32, %c0_i32_0 : i32, i32
  }
  func.func @transform_4(%arg0: i32, %arg1: i32) -> (i32, i32) {
    %c0_i32 = arith.constant 0 : i32
    %c0_i32_0 = arith.constant 0 : i32
    return %c0_i32, %arg0 : i32, i32
  }
  func.func @transform_5(%arg0: i32, %arg1: i32) -> (i32, i32) {
    %c0_i32 = arith.constant 0 : i32
    %c0_i32_0 = arith.constant 0 : i32
    return %c0_i32, %arg0 : i32, i32
  }
  func.func @transform_6(%arg0: i32, %arg1: i32) -> (i32, i32) {
    %c0_i32 = arith.constant 0 : i32
    return %arg1, %arg0 : i32, i32
  }
}

</mosaic_0001>

<llo_original>
// kernel: tpu_custom_call.1
$region0: #{tpu_custom_call.1}
  #allocation0 [shape = 'u32[]', space=smem, size = 0x4, offset = 0x4, fixed_abs, tag = 'smem constant byte address 0x4 - core index']
  #allocation1 [shape = 'u32[144,128]{1,0:T(1,128)}', space=vmem, size = 0x12000, scoped, tag = 'internal scratch']
  %s0 = inlined_call_operand.vmem [shape: f32[8,32], index: 0, kind: input, shape index: {}]
  %s1 = inlined_call_operand.vmem [shape: f32[64,32], index: 1, kind: input, shape index: {}]
  %s2 = inlined_call_operand.vmem [shape: f32[64,32], index: 2, kind: input, shape index: {}]
  %s3 = inlined_call_operand.vmem [shape: f32[1,32], index: 3, kind: input, shape index: {}]
  %s4 = inlined_call_operand.vmem [shape: f32[1,64], index: 4, kind: input, shape index: {}]
  %s5 = inlined_call_operand.vmem [shape: f32[1,64], index: 5, kind: input, shape index: {}]
  %s6 = inlined_call_operand.hbm [shape: f32[8,64], index: 6, kind: output, shape index: {}]
  %s7 = sld [smem:[#allocation0]]
  $region34: #{tpu_custom_call.1} parent=0
    _
  %s9 = ssub.s32 1, %s7
  %s10 = scalar_select 0, %s9, %s7
  $region1: #{tpu_custom_call.1} parent=0
    #allocation2 [shape = 'u8[4096]{0}', space=vmem, size = 0x1000, scoped, tag = 'output window, operand 0, single buffered']
    #allocation3 [shape = 's32[1]{0}', space=sflag, size = 0x4, scoped, tag = 'scoped memory for tpu_custom_call.1']
    %11 = vsyncpa [#allocation3], 0
    // Predicated region
    $region2: #{tpu_custom_call.1} parent=1 // pred_check
      _
    $region3: #{tpu_custom_call.1} parent=1 // pred_check_branch
      %13 = sbr.rel (0) target = $region5
    $region4: #{tpu_custom_call.1} parent=1 // pred_region
      _
    $region5: #{tpu_custom_call.1} parent=1 // pred_fallthru
      _
    // Predicated region
    $region6: #{tpu_custom_call.1} parent=1 // pred_check
      _
    $region7: #{tpu_custom_call.1} parent=1 // pred_check_branch
      %15 = sbr.rel (0) target = $region9
    $region8: #{tpu_custom_call.1} parent=1 // pred_region
      _
    $region9: #{tpu_custom_call.1} parent=1 // pred_fallthru
      _
    // Predicated region
    $region10: #{tpu_custom_call.1} parent=1 // pred_check
      _
    $region11: #{tpu_custom_call.1} parent=1 // pred_check_branch
      %17 = sbr.rel (0) target = $region13
    $region12: #{tpu_custom_call.1} parent=1 // pred_region
      _
    $region13: #{tpu_custom_call.1} parent=1 // pred_fallthru
      _
    // Predicated region
    $region14: #{tpu_custom_call.1} parent=1 // pred_check
      _
    $region15: #{tpu_custom_call.1} parent=1 // pred_check_branch
      %19 = sbr.rel (0) target = $region17
    $region16: #{tpu_custom_call.1} parent=1 // pred_region
      _
    $region17: #{tpu_custom_call.1} parent=1 // pred_fallthru
      _
    // Predicated region
    $region18: #{tpu_custom_call.1} parent=1 // pred_check
      _
    $region19: #{tpu_custom_call.1} parent=1 // pred_check_branch
      %21 = sbr.rel (0) target = $region21
    $region20: #{tpu_custom_call.1} parent=1 // pred_region
      _
    $region21: #{tpu_custom_call.1} parent=1 // pred_fallthru
      _
    // Predicated region
    $region22: #{tpu_custom_call.1} parent=1 // pred_check
      _
    $region23: #{tpu_custom_call.1} parent=1 // pred_check_branch
      %23 = sbr.rel (0) target = $region25
    $region24: #{tpu_custom_call.1} parent=1 // pred_region
      _
    $region25: #{tpu_custom_call.1} parent=1 // pred_fallthru
      _
    %v24 = vld [vmem:[%s0] sm:$0xff]
    %v25 = vld [vmem:[%s3] sm:$0x1]
    %v27 = vlaneseq
    %v28 = vshrl.u32 %v27, 7
    %v29 = vsub.s32 0, %v28
    %v30 = vrot.slane %v25, %v29
    %v32 = vmul.f32 %v24, %v30
    %v33 = vld [vmem:[%s1] sm:$0xff]
    %v34 = vld [vmem:[%s1 + $0x8] sm:$0xff]
    %v35 = vld [vmem:[%s1 + $0x10] sm:$0xff]
    %v36 = vld [vmem:[%s1 + $0x18] sm:$0xff]
    %v37 = vld [vmem:[%s1 + $0x20] sm:$0xff]
    %v38 = vld [vmem:[%s1 + $0x28] sm:$0xff]
    %v39 = vld [vmem:[%s1 + $0x30] sm:$0xff]
    %v40 = vld [vmem:[%s1 + $0x38] sm:$0xff]
    %v41 = vld [vmem:[%s2] sm:$0xff]
    %v42 = vld [vmem:[%s2 + $0x8] sm:$0xff]
    %v43 = vld [vmem:[%s2 + $0x10] sm:$0xff]
    %v44 = vld [vmem:[%s2 + $0x18] sm:$0xff]
    %v45 = vld [vmem:[%s2 + $0x20] sm:$0xff]
    %v46 = vld [vmem:[%s2 + $0x28] sm:$0xff]
    %v47 = vld [vmem:[%s2 + $0x30] sm:$0xff]
    %v48 = vld [vmem:[%s2 + $0x38] sm:$0xff]
    %vm49 = vcmask 261120
    %v51 = vsel %vm49, %v32, 0
    %v54 = vsel %vm49, %v41, 0
    %v57 = vsel %vm49, %v42, 0
    %v60 = vsel %vm49, %v43, 0
    %v63 = vsel %vm49, %v44, 0
    %v66 = vsel %vm49, %v45, 0
    %v69 = vsel %vm49, %v46, 0
    %v72 = vsel %vm49, %v47, 0
    %v75 = vsel %vm49, %v48, 0
    %77 = vmatprep.subr.mxu0 0.0
    %78 = vmatpush1.xpose.msra.mxu0 0.0
    %79 = vmatprep.subr.mxu0 0.0
    %80 = vmatpush1.xpose.msra.mxu0 0.0
    %81 = vmatprep.subr.mxu0 0.0
    %82 = vmatpush1.xpose.msra.mxu0 0.0
    %83 = vmatprep.subr.mxu0 0.0
    %84 = vmatpush1.xpose.msra.mxu0 0.0
    %85 = vmatprep.subr.mxu0 0.0
    %86 = vmatpush1.xpose.msra.mxu0 0.0
    %87 = vmatprep.subr.mxu0 0.0
    %88 = vmatpush1.xpose.msra.mxu0 0.0
    %89 = vmatprep.subr.mxu0 0.0
    %90 = vmatpush1.xpose.msra.mxu0 0.0
    %91 = vmatprep.subr.mxu0 0.0
    %92 = vmatpush1.xpose.msra.mxu0 0.0
    %93 = vmatprep.subr.mxu0 0.0
    %94 = vmatpush1.xpose.msra.mxu0 %v75
    %95 = vmatprep.subr.mxu0 0.0
    %96 = vmatpush1.xpose.msra.mxu0 %v72
    %97 = vmatprep.subr.mxu0 0.0
    %98 = vmatpush1.xpose.msra.mxu0 %v69
    %99 = vmatprep.subr.mxu0 0.0
    %100 = vmatpush1.xpose.msra.mxu0 %v66
    %101 = vmatprep.subr.mxu0 0.0
    %102 = vmatpush1.xpose.msra.mxu0 %v63
    %103 = vmatprep.subr.mxu0 0.0
    %104 = vmatpush1.xpose.msra.mxu0 %v60
    %105 = vmatprep.subr.mxu0 0.0
    %106 = vmatpush1.xpose.msra.mxu0 %v57
    %107 = vmatprep.subr.mxu0 0.0
    %108 = vmatpush1.xpose.msra.mxu0 %v54
    %109 = vmatprep.subr.mxu0 0.0
    %110 = vmatpush2.xpose.msra.mxu0 0.0
    %111 = vmatprep.subr.mxu0 0.0
    %112 = vmatpush2.xpose.msra.mxu0 0.0
    %113 = vmatprep.subr.mxu0 0.0
    %114 = vmatpush2.xpose.msra.mxu0 0.0
    %115 = vmatprep.subr.mxu0 0.0
    %116 = vmatpush2.xpose.msra.mxu0 0.0
    %117 = vmatprep.subr.mxu0 0.0
    %118 = vmatpush2.xpose.msra.mxu0 0.0
    %119 = vmatprep.subr.mxu0 0.0
    %120 = vmatpush2.xpose.msra.mxu0 0.0
    %121 = vmatprep.subr.mxu0 0.0
    %122 = vmatpush2.xpose.msra.mxu0 0.0
    %123 = vmatprep.subr.mxu0 0.0
    %124 = vmatpush2.xpose.msra.mxu0 0.0
    %125 = vmatprep.subr.mxu0 0.0
    %126 = vmatpush2.xpose.msra.mxu0 0.0
    %127 = vmatprep.subr.mxu0 0.0
    %128 = vmatpush2.xpose.msra.mxu0 0.0
    %129 = vmatprep.subr.mxu0 0.0
    %130 = vmatpush2.xpose.msra.mxu0 0.0
    %131 = vmatprep.subr.mxu0 0.0
    %132 = vmatpush2.xpose.msra.mxu0 0.0
    %133 = vmatprep.subr.mxu0 0.0
    %134 = vmatpush2.xpose.msra.mxu0 0.0
    %135 = vmatprep.subr.mxu0 0.0
    %136 = vmatpush2.xpose.msra.mxu0 0.0
    %137 = vmatprep.subr.mxu0 0.0
    %138 = vmatpush2.xpose.msra.mxu0 0.0
    %139 = vmatprep.subr.mxu0 0.0
    %140 = vmatpush2.xpose.msra.mxu0 0.0
    %141 = vmatprep.mubr.f32.mxu0 0.0
    %142 = vmatmul.mubr.f32.gmra.mxu0 %v51
    %v143 = vpop.f32.mrf.mxu0
    %v144 = vadd.f32 0.0, %v143
    %v145 = vpop.f32.mrf.mxu0
    %146 = vdwg.mxu0
    %v147 = vld [vmem:[%s4] sm:$0x1]
    %v149 = vlaneseq
    %v150 = vshrl.u32 %v149, 7
    %v151 = vsub.s32 0, %v150
    %v152 = vrot.slane %v147, %v151
    %v154 = vmul.f32 %v144, %v152
    %v156 = vsel %vm49, %v24, 0
    %v159 = vsel %vm49, %v33, 0
    %v162 = vsel %vm49, %v34, 0
    %v165 = vsel %vm49, %v35, 0
    %v168 = vsel %vm49, %v36, 0
    %v171 = vsel %vm49, %v37, 0
    %v174 = vsel %vm49, %v38, 0
    %v177 = vsel %vm49, %v39, 0
    %v180 = vsel %vm49, %v40, 0
    %182 = vmatprep.subr.mxu0 0.0
    %183 = vmatpush1.xpose.msra.mxu0 0.0
    %184 = vmatprep.subr.mxu0 0.0
    %185 = vmatpush1.xpose.msra.mxu0 0.0
    %186 = vmatprep.subr.mxu0 0.0
    %187 = vmatpush1.xpose.msra.mxu0 0.0
    %188 = vmatprep.subr.mxu0 0.0
    %189 = vmatpush1.xpose.msra.mxu0 0.0
    %190 = vmatprep.subr.mxu0 0.0
    %191 = vmatpush1.xpose.msra.mxu0 0.0
    %192 = vmatprep.subr.mxu0 0.0
    %193 = vmatpush1.xpose.msra.mxu0 0.0
    %194 = vmatprep.subr.mxu0 0.0
    %195 = vmatpush1.xpose.msra.mxu0 0.0
    %196 = vmatprep.subr.mxu0 0.0
    %197 = vmatpush1.xpose.msra.mxu0 0.0
    %198 = vmatprep.subr.mxu0 0.0
    %199 = vmatpush1.xpose.msra.mxu0 %v180
    %200 = vmatprep.subr.mxu0 0.0
    %201 = vmatpush1.xpose.msra.mxu0 %v177
    %202 = vmatprep.subr.mxu0 0.0
    %203 = vmatpush1.xpose.msra.mxu0 %v174
    %204 = vmatprep.subr.mxu0 0.0
    %205 = vmatpush1.xpose.msra.mxu0 %v171
    %206 = vmatprep.subr.mxu0 0.0
    %207 = vmatpush1.xpose.msra.mxu0 %v168
    %208 = vmatprep.subr.mxu0 0.0
    %209 = vmatpush1.xpose.msra.mxu0 %v165
    %210 = vmatprep.subr.mxu0 0.0
    %211 = vmatpush1.xpose.msra.mxu0 %v162
    %212 = vmatprep.subr.mxu0 0.0
    %213 = vmatpush1.xpose.msra.mxu0 %v159
    %214 = vmatprep.subr.mxu0 0.0
    %215 = vmatpush2.xpose.msra.mxu0 0.0
    %216 = vmatprep.subr.mxu0 0.0
    %217 = vmatpush2.xpose.msra.mxu0 0.0
    %218 = vmatprep.subr.mxu0 0.0
    %219 = vmatpush2.xpose.msra.mxu0 0.0
    %220 = vmatprep.subr.mxu0 0.0
    %221 = vmatpush2.xpose.msra.mxu0 0.0
    %222 = vmatprep.subr.mxu0 0.0
    %223 = vmatpush2.xpose.msra.mxu0 0.0
    %224 = vmatprep.subr.mxu0 0.0
    %225 = vmatpush2.xpose.msra.mxu0 0.0
    %226 = vmatprep.subr.mxu0 0.0
    %227 = vmatpush2.xpose.msra.mxu0 0.0
    %228 = vmatprep.subr.mxu0 0.0
    %229 = vmatpush2.xpose.msra.mxu0 0.0
    %230 = vmatprep.subr.mxu0 0.0
    %231 = vmatpush2.xpose.msra.mxu0 0.0
    %232 = vmatprep.subr.mxu0 0.0
    %233 = vmatpush2.xpose.msra.mxu0 0.0
    %234 = vmatprep.subr.mxu0 0.0
    %235 = vmatpush2.xpose.msra.mxu0 0.0
    %236 = vmatprep.subr.mxu0 0.0
    %237 = vmatpush2.xpose.msra.mxu0 0.0
    %238 = vmatprep.subr.mxu0 0.0
    %239 = vmatpush2.xpose.msra.mxu0 0.0
    %240 = vmatprep.subr.mxu0 0.0
    %241 = vmatpush2.xpose.msra.mxu0 0.0
    %242 = vmatprep.subr.mxu0 0.0
    %243 = vmatpush2.xpose.msra.mxu0 0.0
    %244 = vmatprep.subr.mxu0 0.0
    %245 = vmatpush2.xpose.msra.mxu0 0.0
    %246 = vmatprep.mubr.f32.mxu0 0.0
    %247 = vmatmul.mubr.f32.gmra.mxu0 %v156
    %v248 = vpop.f32.mrf.mxu0
    %v249 = vadd.f32 %v154, %v248
    %v250 = vpop.f32.mrf.mxu0
    %251 = vdwg.mxu0
    %v252 = vld [vmem:[%s5] sm:$0x1]
    %v254 = vlaneseq
    %v255 = vshrl.u32 %v254, 7
    %v256 = vsub.s32 0, %v255
    %v257 = vrot.slane %v252, %v256
    %v259 = vadd.f32 %v249, %v257
    %vm260 = vcmask 523264
    %261 = vst.msk [vmem:[#allocation2] sm:$0xff] %vm260, %v259
    // Predicated region
    $region26: #{tpu_custom_call.1} parent=1 // pred_check
      _
    $region27: #{tpu_custom_call.1} parent=1 // pred_check_branch
      %263 = sbr.rel (0) target = $region29
    $region28: #{tpu_custom_call.1} parent=1 // pred_region
      %s265 = ssub.s32 128, 128
      %266 = vsyncadd [#allocation3], %s265
      %s268 = sshll.u32 [#allocation2], 4
      %s269 = int_to_ptr.vmem [resolvable:$true] %s268
      %271 = dma.vmem_to_hbm [thread:$0]  %s269, 128, %s6, [#allocation3]
    $region29: #{tpu_custom_call.1} parent=1 // pred_fallthru
      _
    // Predicated region
    $region30: #{tpu_custom_call.1} parent=1 // pred_check
      _
    $region31: #{tpu_custom_call.1} parent=1 // pred_check_branch
      %273 = sbr.rel (0) target = $region33
    $region32: #{tpu_custom_call.1} parent=1 // pred_region
      %274 = dma.done [#allocation3], 128
    $region33: #{tpu_custom_call.1} parent=1 // pred_fallthru
      _
    %275 = vsyncpa [#allocation3], 1

</llo_original>
